<compile_context>
chip_gen: v5e
topology: v5e:2x2
jax: 0.10.0
libtpu: 0.0.40
codegen_flags: <defaults>
</compile_context>

<pallas_src>
import functools
from typing import NamedTuple

import jax
import jax.numpy as jnp
from jax.experimental import pallas as pl
from jax.experimental.pallas import tpu as pltpu

_LANE = 128


def _round_up(n, m):
    return ((n + m - 1) // m) * m


def _cdiv(a, b):
    return -(-a // b)


# ------------------------------- kernel -------------------------------------

def _mlp_kernel(last_relu, x_ref, w_first_ref, b_fm_ref, w_mid_ref,
                w_last_ref, b_last_ref, out_ref):
    """Fused MLP: layer1 + n_mid middle layers + last layer.

    All matmuls accumulate in f32 on the MXU; bias-add / ReLU run in f32 on
    the VPU; activations are cast to the weight dtype (bf16 by default) right
    before each dot so the MXU sees a single-pass native-dtype matmul.
    """
    wdt = w_first_ref.dtype

    # Layer 1: (tb, in_cols) @ (in_cols, 128)
    h = jnp.dot(x_ref[...], w_first_ref[...],
                preferred_element_type=jnp.float32)
    h = jnp.maximum(h + b_fm_ref[0], 0.0)

    # Middle layers (static unroll; every tile is (tb,128) x (128,128)).
    for i in range(w_mid_ref.shape[0]):
        h = jnp.dot(h.astype(wdt), w_mid_ref[i],
                    preferred_element_type=jnp.float32)
        h = jnp.maximum(h + b_fm_ref[i + 1], 0.0)

    # Last layer: ReLU for the encoder bottleneck (layer 3), none for layer 6.
    z = jnp.dot(h.astype(wdt), w_last_ref[...],
                preferred_element_type=jnp.float32) + b_last_ref[...]
    if last_relu:
        z = jnp.maximum(z, 0.0)
    out_ref[...] = z.astype(out_ref.dtype)


# --------------------------- parameter packing -------------------------------

class PackedParams(NamedTuple):
    w_first: jax.Array      # (in_cols, 128)            weight dtype
    b_fm: jax.Array         # (1 + n_mid, 1, 128)       f32
    w_mid: jax.Array        # (n_mid, 128, 128)         weight dtype
    w_last: jax.Array       # (128, out_cols)           weight dtype
    b_last: jax.Array       # (1, out_cols)             f32
    valid_out: int          # true (unpadded) output width
    last_relu: bool         # True for encoder (layer 3), False for layer 6


def _pad_to(a, rows, cols):
    return jnp.pad(a, ((0, rows - a.shape[0]), (0, cols - a.shape[1])))


def pack_params(params, train_mode=False, weight_dtype=jnp.bfloat16):
    """One-time host-side packing: 128-pad, stack, and cast to stream dtype.

    params: list of 6 (W, b) with W of shape (in_features, out_features) and
    b of shape (1, out_features). Biases stay f32 (bias/ReLU path is f32).
    """
    n_layers = 6 if train_mode else 3
    layers = params[:n_layers]

    w1, b1 = layers[0]
    mid = layers[1:-1]
    wl, bl = layers[-1]

    out_cols = _round_up(wl.shape[1], _LANE)

    w_first = _pad_to(w1, w1.shape[0], _LANE).astype(weight_dtype)
    w_mid = jnp.stack([_pad_to(w, _LANE, _LANE) for (w, _) in mid]
                      ).astype(weight_dtype)
    w_last = _pad_to(wl, _LANE, out_cols).astype(weight_dtype)

    b_fm = jnp.stack([_pad_to(b.reshape(1, -1), 1, _LANE)
                      for b in [b1] + [b for (_, b) in mid]]
                     ).astype(jnp.float32)
    b_last = _pad_to(bl.reshape(1, -1), 1, out_cols).astype(jnp.float32)

    return PackedParams(w_first, b_fm, w_mid, w_last, b_last,
                        valid_out=int(wl.shape[1]),
                        last_relu=not train_mode)


# ------------------------------- forward ------------------------------------

def encoder_network_forward(x, packed: PackedParams, *, tile_b=1024,
                            out_dtype=jnp.float32):
    """Fused Pallas forward.

    x      : (batch, n_obs) input (any float dtype; cast to the weight dtype
             on the host so the activation stream matches the weight stream).
    packed : output of pack_params(). Returns the bottleneck (batch, 72) for
             the encoder packing or the reconstruction (batch, n_obs) for the
             autoencoder packing, matching the PyTorch module.
    """
    batch, in_cols = x.shape
    assert in_cols == packed.w_first.shape[0]
    out_cols = packed.w_last.shape[1]

    # Tile selection: amortize the ~0.35 us/step overhead with big tiles,
    # minimize batch-padding waste, and give the "parallel" batch axis at
    # least 2 steps (v7x two-TC split) once the batch is big enough to split.
    min_steps = 2 if batch >= 16 else 1
    n_steps = max(min_steps, _cdiv(batch, tile_b))
    tb = _round_up(_cdiv(batch, n_steps), 8)
    padded_b = tb * n_steps

    # Input columns are NOT padded (block last dim == full array dim is
    # legal); only batch rows are padded. Stream dtype = weight dtype (bf16).
    x_p = jnp.pad(x, ((0, padded_b - batch), (0, 0))).astype(
        packed.w_first.dtype)

    kernel = functools.partial(_mlp_kernel, packed.last_relu)

    in_specs = [
        pl.BlockSpec((tb, in_cols), lambda i: (i, 0)),
        # Full-array, constant-index specs: DMA'd once, VMEM-resident.
        pl.BlockSpec(packed.w_first.shape, lambda i: (0, 0)),
        pl.BlockSpec(packed.b_fm.shape, lambda i: (0, 0, 0)),
        pl.BlockSpec(packed.w_mid.shape, lambda i: (0, 0, 0)),
        pl.BlockSpec(packed.w_last.shape, lambda i: (0, 0)),
        pl.BlockSpec(packed.b_last.shape, lambda i: (0, 0)),
    ]

    # Raise the scoped-VMEM limit only if the double-buffered activation
    # streams exceed the 32 MiB default (stay well under v7x's 64 MiB).
    act_bytes = 2 * tb * (in_cols * x_p.dtype.itemsize
                          + out_cols * jnp.dtype(out_dtype).itemsize)
    cp_kwargs = dict(dimension_semantics=("parallel",))
    if act_bytes > (24 << 20):
        cp_kwargs["vmem_limit_bytes"] = min(act_bytes + (8 << 20), 48 << 20)

    out = pl.pallas_call(
        kernel,
        grid=(n_steps,),
        in_specs=in_specs,
        out_specs=pl.BlockSpec((tb, out_cols), lambda i: (i, 0)),
        out_shape=jax.ShapeDtypeStruct((padded_b, out_cols), out_dtype),
        compiler_params=pltpu.CompilerParams(**cp_kwargs),
    )(x_p, packed.w_first, packed.b_fm, packed.w_mid,
      packed.w_last, packed.b_last)

    return out[:batch, :packed.valid_out]


# --------------------------- init + reference --------------------------------

def init_params(key, n_obs):
    """PyTorch-Linear-style init: U(-1/sqrt(fan_in), +1/sqrt(fan_in))."""
    sizes = [(n_obs, 124), (124, 102), (102, 72),
             (72, 102), (102, 124), (124, n_obs)]
    params = []
    for (fan_in, fan_out) in sizes:
        key, kw, kb = jax.random.split(key, 3)
        bound = 1.0 / jnp.sqrt(float(fan_in))
        w = jax.random.uniform(kw, (fan_in, fan_out), jnp.float32, -bound, bound)
        b = jax.random.uniform(kb, (1, fan_out), jnp.float32, -bound, bound)
        params.append((w, b))
    return params


def encoder_network_ref(x, params, train_mode=False):
    """Pure-JAX reference (unpadded) for correctness checking."""
    h = x
    bottleneck = None
    for i, (w, b) in enumerate(params):
        h = h @ w + b
        if i < 5:
            h = jnp.maximum(h, 0.0)
        if i == 2:
            bottleneck = h
    return h if train_mode else bottleneck


# --------------------------------- main ---------------------------------------

if __name__ == "__main__":
    n_observations = 64
    batch = 8

    key = jax.random.PRNGKey(0)
    key, kx = jax.random.split(key)
    x = jax.random.normal(kx, (batch, n_observations), jnp.float32)
    params = init_params(key, n_observations)

    y_ref = encoder_network_ref(x, params, train_mode=False)
    recon_ref = encoder_network_ref(x, params, train_mode=True)

    # ---- f32 streaming path: exactness of padding/stacking plumbing --------
    enc_f32 = pack_params(params, train_mode=False, weight_dtype=jnp.float32)
    ae_f32 = pack_params(params, train_mode=True, weight_dtype=jnp.float32)
    y32 = encoder_network_forward(x, enc_f32)
    r32 = encoder_network_forward(x, ae_f32)
    jax.block_until_ready((y32, r32))
    assert y32.shape == (batch, 72)
    assert r32.shape == (batch, n_observations)
    assert jnp.allclose(y32, y_ref, atol=1e-5, rtol=1e-5)
    assert jnp.allclose(r32, recon_ref, atol=1e-5, rtol=1e-5)

    # ---- default bf16 streaming path (all generations) ---------------------
    enc_bf16 = pack_params(params, train_mode=False)   # bf16 weights default
    ae_bf16 = pack_params(params, train_mode=True)
    y16 = encoder_network_forward(x, enc_bf16)
    r16 = encoder_network_forward(x, ae_bf16)
    jax.block_until_ready((y16, r16))
    assert jnp.allclose(y16, y_ref, atol=0.1, rtol=0.1)
    assert jnp.allclose(r16, recon_ref, atol=0.1, rtol=0.1)

    # ---- larger batch: multi-step parallel grid, minimal batch padding -----
    key, kx2 = jax.random.split(key)
    xb = jax.random.normal(kx2, (300, n_observations), jnp.float32)
    yb_ref = encoder_network_ref(xb, params, train_mode=False)
    yb32 = encoder_network_forward(xb, enc_f32)          # tb=152, 2 grid steps
    jax.block_until_ready(yb32)
    assert yb32.shape == (300, 72)
    assert jnp.allclose(yb32, yb_ref, atol=1e-5, rtol=1e-5)

    # bf16 stream + bf16 writeback (halved HBM writeback for inference path).
    yb16 = encoder_network_forward(xb, enc_bf16, out_dtype=jnp.bfloat16)
    jax.block_until_ready(yb16)
    assert jnp.allclose(yb16.astype(jnp.float32), yb_ref, atol=0.1, rtol=0.1)

    print("KERNEL_OK")
</pallas_src>

<mosaic_0001>
module attributes {stable_mosaic.version = 11 : i64} {
  func.func @_mlp_kernel(%arg0: i32, %arg1: memref<8x64xf32, #tpu.memory_space<vmem>>, %arg2: memref<64x128xf32, #tpu.memory_space<vmem>>, %arg3: memref<2x1x128xf32, #tpu.memory_space<vmem>>, %arg4: memref<1x128x128xf32, #tpu.memory_space<vmem>>, %arg5: memref<128x128xf32, #tpu.memory_space<vmem>>, %arg6: memref<1x128xf32, #tpu.memory_space<vmem>>, %arg7: memref<8x128xf32, #tpu.memory_space<vmem>>) attributes {dimension_semantics = [#tpu.dimension_semantics<parallel>], iteration_bounds = array<i64: 1>, scalar_prefetch = 0 : i64, scratch_operands = 0 : i64, tpu.core_type = #tpu.core_type<tc>, window_params = [{transform_indices = @transform_0, window_bounds = array<i64: 8, 64>}, {pipeline_mode = #tpu.pipeline_mode<synchronous>, transform_indices = @transform_1, window_bounds = array<i64: 64, 128>}, {pipeline_mode = #tpu.pipeline_mode<synchronous>, transform_indices = @transform_2, window_bounds = array<i64: 2, 1, 128>}, {pipeline_mode = #tpu.pipeline_mode<synchronous>, transform_indices = @transform_3, window_bounds = array<i64: 1, 128, 128>}, {pipeline_mode = #tpu.pipeline_mode<synchronous>, transform_indices = @transform_4, window_bounds = array<i64: 128, 128>}, {pipeline_mode = #tpu.pipeline_mode<synchronous>, transform_indices = @transform_5, window_bounds = array<i64: 1, 128>}, {transform_indices = @transform_6, window_bounds = array<i64: 8, 128>}]} {
    %c0 = arith.constant 0 : index
    %c0_0 = arith.constant 0 : index
    %0 = vector.load %arg1[%c0, %c0_0] : memref<8x64xf32, #tpu.memory_space<vmem>>, vector<8x64xf32>
    %c0_1 = arith.constant 0 : index
    %c0_2 = arith.constant 0 : index
    %1 = vector.load %arg2[%c0_1, %c0_2] : memref<64x128xf32, #tpu.memory_space<vmem>>, vector<64x128xf32>
    %cst = arith.constant dense<0.000000e+00> : vector<8x128xf32>
    %2 = tpu.matmul %0, %1, %cst {dimension_numbers = #tpu.dot_dimension_numbers<[1], [0], [0], [1], [0, 0, 1, 1], [], []>} : vector<8x64xf32>, vector<64x128xf32>, vector<8x128xf32> -> vector<8x128xf32>
    %c0_3 = arith.constant 0 : index
    %c0_4 = arith.constant 0 : index
    %c0_5 = arith.constant 0 : index
    %3 = vector.load %arg3[%c0_3, %c0_4, %c0_5] : memref<2x1x128xf32, #tpu.memory_space<vmem>>, vector<1x1x128xf32>
    %4 = vector.shape_cast %3 : vector<1x1x128xf32> to vector<1x128xf32>
    %5 = vector.broadcast %4 : vector<1x128xf32> to vector<8x128xf32>
    %6 = arith.addf %2, %5 : vector<8x128xf32>
    %cst_6 = arith.constant 0.000000e+00 : f32
    %7 = vector.broadcast %cst_6 : f32 to vector<8x128xf32>
    %8 = arith.maximumf %6, %7 : vector<8x128xf32>
    %c0_7 = arith.constant 0 : index
    %c0_8 = arith.constant 0 : index
    %c0_9 = arith.constant 0 : index
    %9 = vector.load %arg4[%c0_7, %c0_8, %c0_9] : memref<1x128x128xf32, #tpu.memory_space<vmem>>, vector<1x128x128xf32>
    %10 = vector.shape_cast %9 : vector<1x128x128xf32> to vector<128x128xf32>
    %cst_10 = arith.constant dense<0.000000e+00> : vector<8x128xf32>
    %11 = tpu.matmul %8, %10, %cst_10 {dimension_numbers = #tpu.dot_dimension_numbers<[1], [0], [0], [1], [0, 0, 1, 1], [], []>} : vector<8x128xf32>, vector<128x128xf32>, vector<8x128xf32> -> vector<8x128xf32>
    %c1 = arith.constant 1 : index
    %c0_11 = arith.constant 0 : index
    %c0_12 = arith.constant 0 : index
    %12 = vector.load %arg3[%c1, %c0_11, %c0_12] : memref<2x1x128xf32, #tpu.memory_space<vmem>>, vector<1x1x128xf32>
    %13 = vector.shape_cast %12 : vector<1x1x128xf32> to vector<1x128xf32>
    %14 = vector.broadcast %13 : vector<1x128xf32> to vector<8x128xf32>
    %15 = arith.addf %11, %14 : vector<8x128xf32>
    %cst_13 = arith.constant 0.000000e+00 : f32
    %16 = vector.broadcast %cst_13 : f32 to vector<8x128xf32>
    %17 = arith.maximumf %15, %16 : vector<8x128xf32>
    %c0_14 = arith.constant 0 : index
    %c0_15 = arith.constant 0 : index
    %18 = vector.load %arg5[%c0_14, %c0_15] : memref<128x128xf32, #tpu.memory_space<vmem>>, vector<128x128xf32>
    %cst_16 = arith.constant dense<0.000000e+00> : vector<8x128xf32>
    %19 = tpu.matmul %17, %18, %cst_16 {dimension_numbers = #tpu.dot_dimension_numbers<[1], [0], [0], [1], [0, 0, 1, 1], [], []>} : vector<8x128xf32>, vector<128x128xf32>, vector<8x128xf32> -> vector<8x128xf32>
    %c0_17 = arith.constant 0 : index
    %c0_18 = arith.constant 0 : index
    %20 = vector.load %arg6[%c0_17, %c0_18] : memref<1x128xf32, #tpu.memory_space<vmem>>, vector<1x128xf32>
    %21 = vector.broadcast %20 : vector<1x128xf32> to vector<8x128xf32>
    %22 = arith.addf %19, %21 : vector<8x128xf32>
    %cst_19 = arith.constant 0.000000e+00 : f32
    %23 = vector.broadcast %cst_19 : f32 to vector<8x128xf32>
    %24 = arith.maximumf %22, %23 : vector<8x128xf32>
    %c0_20 = arith.constant 0 : index
    %c0_21 = arith.constant 0 : index
    %25 = vector.load %arg7[%c0_20, %c0_21] : memref<8x128xf32, #tpu.memory_space<vmem>>, vector<8x128xf32>
    tpu.vector_store %arg7[%c0_20, %c0_21], %24 {strides = array<i32>} : memref<8x128xf32, #tpu.memory_space<vmem>>, vector<8x128xf32>,
    return
  }
  func.func @transform_0(%arg0: i32) -> (i32, i32) {
    %c0_i32 = arith.constant 0 : i32
    %c0_i32_0 = arith.constant 0 : i32
    return %arg0, %c0_i32 : i32, i32
  }
  func.func @transform_1(%arg0: i32) -> (i32, i32) {
    %c0_i32 = arith.constant 0 : i32
    %c0_i32_0 = arith.constant 0 : i32
    %c0_i32_1 = arith.constant 0 : i32
    return %c0_i32, %c0_i32_0 : i32, i32
  }
  func.func @transform_2(%arg0: i32) -> (i32, i32, i32) {
    %c0_i32 = arith.constant 0 : i32
    %c0_i32_0 = arith.constant 0 : i32
    %c0_i32_1 = arith.constant 0 : i32
    %c0_i32_2 = arith.constant 0 : i32
    return %c0_i32, %c0_i32_0, %c0_i32_1 : i32, i32, i32
  }
  func.func @transform_3(%arg0: i32) -> (i32, i32, i32) {
    %c0_i32 = arith.constant 0 : i32
    %c0_i32_0 = arith.constant 0 : i32
    %c0_i32_1 = arith.constant 0 : i32
    %c0_i32_2 = arith.constant 0 : i32
    return %c0_i32, %c0_i32_0, %c0_i32_1 : i32, i32, i32
  }
  func.func @transform_4(%arg0: i32) -> (i32, i32) {
    %c0_i32 = arith.constant 0 : i32
    %c0_i32_0 = arith.constant 0 : i32
    %c0_i32_1 = arith.constant 0 : i32
    return %c0_i32, %c0_i32_0 : i32, i32
  }
  func.func @transform_5(%arg0: i32) -> (i32, i32) {
    %c0_i32 = arith.constant 0 : i32
    %c0_i32_0 = arith.constant 0 : i32
    %c0_i32_1 = arith.constant 0 : i32
    return %c0_i32, %c0_i32_0 : i32, i32
  }
  func.func @transform_6(%arg0: i32) -> (i32, i32) {
    %c0_i32 = arith.constant 0 : i32
    %c0_i32_0 = arith.constant 0 : i32
    return %arg0, %c0_i32 : i32, i32
  }
}

</mosaic_0001>

<llo_original>
// kernel: tpu_custom_call.1
$region0: #{tpu_custom_call.1}
  #allocation0 [shape = 'u32[]', space=smem, size = 0x4, offset = 0x4, fixed_abs, tag = 'smem constant byte address 0x4 - core index']
  #allocation1 [shape = 'u32[72,128]{1,0:T(1,128)}', space=vmem, size = 0x9000, scoped, tag = 'internal scratch']
  %s0 = inlined_call_operand.hbm [shape: f32[8,64], index: 0, kind: input, shape index: {}]
  %s1 = inlined_call_operand.hbm [shape: f32[64,128], index: 1, kind: input, shape index: {}]
  %s2 = inlined_call_operand.hbm [shape: f32[2,1,128], index: 2, kind: input, shape index: {}]
  %s3 = inlined_call_operand.hbm [shape: f32[1,128,128], index: 3, kind: input, shape index: {}]
  %s4 = inlined_call_operand.hbm [shape: f32[128,128], index: 4, kind: input, shape index: {}]
  %s5 = inlined_call_operand.vmem [shape: f32[1,128], index: 5, kind: input, shape index: {}]
  %s6 = inlined_call_operand.hbm [shape: f32[8,128], index: 6, kind: output, shape index: {}]
  %s7 = sld [smem:[#allocation0]]
  $region54: #{tpu_custom_call.1} parent=0
    _
  %s9 = ssub.s32 1, %s7
  %s10 = scalar_select 0, %s9, %s7
  $region1: #{tpu_custom_call.1} parent=0
    #allocation2 [shape = 'u8[4096]{0}', space=vmem, size = 0x1000, scoped, tag = 'input window, operand 0, single buffered']
    #allocation3 [shape = 's32[1]{0}', space=sflag, size = 0x4, scoped, tag = 'scoped memory for tpu_custom_call.1']
    #allocation4 [shape = 's32[1]{0}', space=sflag, size = 0x4, scoped, tag = 'scoped memory for tpu_custom_call.1']
    #allocation5 [shape = 'u8[32768]{0}', space=vmem, size = 0x8000, scoped, tag = 'input window, operand 1, single buffered']
    #allocation6 [shape = 's32[1]{0}', space=sflag, size = 0x4, scoped, tag = 'scoped memory for tpu_custom_call.1']
    #allocation7 [shape = 'u8[1024]{0}', space=vmem, size = 0x400, scoped, tag = 'input window, operand 2, single buffered']
    #allocation8 [shape = 'u8[65536]{0}', space=vmem, size = 0x10000, scoped, tag = 'input window, operand 3, single buffered']
    #allocation9 [shape = 's32[1]{0}', space=sflag, size = 0x4, scoped, tag = 'scoped memory for tpu_custom_call.1']
    #allocation10 [shape = 'u8[65536]{0}', space=vmem, size = 0x10000, scoped, tag = 'input window, operand 4, single buffered']
    #allocation11 [shape = 'u8[4096]{0}', space=vmem, size = 0x1000, scoped, tag = 'output window, operand 0, single buffered']
    %11 = vsyncpa [#allocation3], 0
    %12 = vsyncpa [#allocation6], 0
    %13 = vsyncpa [#allocation9], 0
    %14 = vsyncpa [#allocation4], 0
    // Predicated region
    $region2: #{tpu_custom_call.1} parent=1 // pred_check
      _
    $region3: #{tpu_custom_call.1} parent=1 // pred_check_branch
      %16 = sbr.rel (0) target = $region5
    $region4: #{tpu_custom_call.1} parent=1 // pred_region
      %18 = vsyncadd [#allocation3], 0
      %s20 = sshll.u32 %s0, 4
      %s21 = int_to_ptr.hbm [resolvable:$true] %s20
      %s22 = sshll.u32 [#allocation2], 4
      %s23 = int_to_ptr.vmem [resolvable:$true] %s22
      %25 = dma.hbm_to_vmem [thread:$0]  %s21, 128, %s23, [#allocation3]
    $region5: #{tpu_custom_call.1} parent=1 // pred_fallthru
      _
    // Predicated region
    $region6: #{tpu_custom_call.1} parent=1 // pred_check
      _
    $region7: #{tpu_custom_call.1} parent=1 // pred_check_branch
      %27 = sbr.rel (0) target = $region9
    $region8: #{tpu_custom_call.1} parent=1 // pred_region
      %29 = vsyncadd [#allocation6], 0
      %s30 = sshll.u32 %s1, 4
      %s31 = int_to_ptr.hbm [resolvable:$true] %s30
      %s32 = sshll.u32 [#allocation5], 4
      %s33 = int_to_ptr.vmem [resolvable:$true] %s32
      %38 = dma.hbm_to_vmem [thread:$0]  %s31, 1024, %s33, [#allocation6], 128, 128, 8
    $region9: #{tpu_custom_call.1} parent=1 // pred_fallthru
      _
    // Predicated region
    $region10: #{tpu_custom_call.1} parent=1 // pred_check
      _
    $region11: #{tpu_custom_call.1} parent=1 // pred_check_branch
      %40 = sbr.rel (0) target = $region13
    $region12: #{tpu_custom_call.1} parent=1 // pred_region
      %42 = vsyncadd [#allocation6], 0
      %s43 = sshll.u32 %s2, 4
      %s44 = int_to_ptr.hbm [resolvable:$true] %s43
      %s45 = sshll.u32 [#allocation7], 4
      %s46 = int_to_ptr.vmem [resolvable:$true] %s45
      %51 = dma.hbm_to_vmem [thread:$0]  %s44, 32, %s46, [#allocation6], 16, 16, 1
    $region13: #{tpu_custom_call.1} parent=1 // pred_fallthru
      _
    // Predicated region
    $region14: #{tpu_custom_call.1} parent=1 // pred_check
      _
    $region15: #{tpu_custom_call.1} parent=1 // pred_check_branch
      %53 = sbr.rel (0) target = $region17
    $region16: #{tpu_custom_call.1} parent=1 // pred_region
      %55 = vsyncadd [#allocation9], 0
      %s56 = sshll.u32 %s3, 4
      %s57 = int_to_ptr.hbm [resolvable:$true] %s56
      %s58 = sshll.u32 [#allocation8], 4
      %s59 = int_to_ptr.vmem [resolvable:$true] %s58
      %64 = dma.hbm_to_vmem [thread:$0]  %s57, 2048, %s59, [#allocation9], 128, 128, 8
    $region17: #{tpu_custom_call.1} parent=1 // pred_fallthru
      _
    // Predicated region
    $region18: #{tpu_custom_call.1} parent=1 // pred_check
      _
    $region19: #{tpu_custom_call.1} parent=1 // pred_check_branch
      %66 = sbr.rel (0) target = $region21
    $region20: #{tpu_custom_call.1} parent=1 // pred_region
      %68 = vsyncadd [#allocation9], 0
      %s69 = sshll.u32 %s4, 4
      %s70 = int_to_ptr.hbm [resolvable:$true] %s69
      %s71 = sshll.u32 [#allocation10], 4
      %s72 = int_to_ptr.vmem [resolvable:$true] %s71
      %77 = dma.hbm_to_vmem [thread:$0]  %s70, 2048, %s72, [#allocation9], 128, 128, 8
    $region21: #{tpu_custom_call.1} parent=1 // pred_fallthru
      _
    // Predicated region
    $region22: #{tpu_custom_call.1} parent=1 // pred_check
      _
    $region23: #{tpu_custom_call.1} parent=1 // pred_check_branch
      %79 = sbr.rel (0) target = $region25
    $region24: #{tpu_custom_call.1} parent=1 // pred_region
      _
    $region25: #{tpu_custom_call.1} parent=1 // pred_fallthru
      _
    // Predicated region
    $region26: #{tpu_custom_call.1} parent=1 // pred_check
      _
    $region27: #{tpu_custom_call.1} parent=1 // pred_check_branch
      %81 = sbr.rel (0) target = $region29
    $region28: #{tpu_custom_call.1} parent=1 // pred_region
      %83 = dma.done [#allocation3], 128
    $region29: #{tpu_custom_call.1} parent=1 // pred_fallthru
      _
    // Predicated region
    $region30: #{tpu_custom_call.1} parent=1 // pred_check
      _
    $region31: #{tpu_custom_call.1} parent=1 // pred_check_branch
      %85 = sbr.rel (0) target = $region33
    $region32: #{tpu_custom_call.1} parent=1 // pred_region
      %87 = dma.done [#allocation6], 1024
    $region33: #{tpu_custom_call.1} parent=1 // pred_fallthru
      _
    // Predicated region
    $region34: #{tpu_custom_call.1} parent=1 // pred_check
      _
    $region35: #{tpu_custom_call.1} parent=1 // pred_check_branch
      %89 = sbr.rel (0) target = $region37
    $region36: #{tpu_custom_call.1} parent=1 // pred_region
      %91 = dma.done [#allocation6], 32
    $region37: #{tpu_custom_call.1} parent=1 // pred_fallthru
      _
    // Predicated region
    $region38: #{tpu_custom_call.1} parent=1 // pred_check
      _
    $region39: #{tpu_custom_call.1} parent=1 // pred_check_branch
      %93 = sbr.rel (0) target = $region41
    $region40: #{tpu_custom_call.1} parent=1 // pred_region
      %95 = dma.done [#allocation9], 2048
    $region41: #{tpu_custom_call.1} parent=1 // pred_fallthru
      _
    // Predicated region
    $region42: #{tpu_custom_call.1} parent=1 // pred_check
      _
    $region43: #{tpu_custom_call.1} parent=1 // pred_check_branch
      %97 = sbr.rel (0) target = $region45
    $region44: #{tpu_custom_call.1} parent=1 // pred_region
      %99 = dma.done [#allocation9], 2048
    $region45: #{tpu_custom_call.1} parent=1 // pred_fallthru
      _
    %v100 = vld [vmem:[#allocation2] sm:$0xff]
    %v101 = vld [vmem:[#allocation5] sm:$0xff]
    %v102 = vld [vmem:[#allocation5 + $0x8] sm:$0xff]
    %v103 = vld [vmem:[#allocation5 + $0x10] sm:$0xff]
    %v104 = vld [vmem:[#allocation5 + $0x18] sm:$0xff]
    %v105 = vld [vmem:[#allocation5 + $0x20] sm:$0xff]
    %v106 = vld [vmem:[#allocation5 + $0x28] sm:$0xff]
    %v107 = vld [vmem:[#allocation5 + $0x30] sm:$0xff]
    %v108 = vld [vmem:[#allocation5 + $0x38] sm:$0xff]
    %v109 = vld [vmem:[#allocation7] sm:$0x1]
    %v111 = vperm.slane %v109, 0
    %vm113 = vcmask 523264
    %v115 = vsel %vm113, %v100, 0
    %117 = vmatpush.msra.mxu0 0.0
    %118 = vmatpush.msra.mxu0 0.0
    %119 = vmatpush.msra.mxu0 0.0
    %120 = vmatpush.msra.mxu0 0.0
    %121 = vmatpush.msra.mxu0 0.0
    %122 = vmatpush.msra.mxu0 0.0
    %123 = vmatpush.msra.mxu0 0.0
    %124 = vmatpush.msra.mxu0 0.0
    %125 = vmatpush.msra.mxu0 %v108
    %126 = vmatpush.msra.mxu0 %v107
    %127 = vmatpush.msra.mxu0 %v106
    %128 = vmatpush.msra.mxu0 %v105
    %129 = vmatpush.msra.mxu0 %v104
    %130 = vmatpush.msra.mxu0 %v103
    %131 = vmatpush.msra.mxu0 %v102
    %132 = vmatpush.msra.mxu0 %v101
    %133 = vmatmul.f32.gmra.mxu0 %v115
    %v134 = vpop.f32.mrf.mxu0
    %v135 = vadd.f32 %v111, %v134
    %136 = vdwg.mxu0
    %v137 = vmax.f32 %v135, 0.0
    %v138 = vld [vmem:[#allocation8] sm:$0xff]
    %v139 = vld [vmem:[#allocation8 + $0x8] sm:$0xff]
    %v140 = vld [vmem:[#allocation8 + $0x10] sm:$0xff]
    %v141 = vld [vmem:[#allocation8 + $0x18] sm:$0xff]
    %v142 = vld [vmem:[#allocation8 + $0x20] sm:$0xff]
    %v143 = vld [vmem:[#allocation8 + $0x28] sm:$0xff]
    %v144 = vld [vmem:[#allocation8 + $0x30] sm:$0xff]
    %v145 = vld [vmem:[#allocation8 + $0x38] sm:$0xff]
    %v146 = vld [vmem:[#allocation8 + $0x40] sm:$0xff]
    %v147 = vld [vmem:[#allocation8 + $0x48] sm:$0xff]
    %v148 = vld [vmem:[#allocation8 + $0x50] sm:$0xff]
    %v149 = vld [vmem:[#allocation8 + $0x58] sm:$0xff]
    %v150 = vld [vmem:[#allocation8 + $0x60] sm:$0xff]
    %v151 = vld [vmem:[#allocation8 + $0x68] sm:$0xff]
    %v152 = vld [vmem:[#allocation8 + $0x70] sm:$0xff]
    %v153 = vld [vmem:[#allocation8 + $0x78] sm:$0xff]
    %s154 = scalar_lea.vmem [#allocation7], 1
    %v155 = vld [vmem:[%s154] sm:$0x1]
    %v157 = vperm.slane %v155, 0
    %159 = vmatpush.msra.mxu0 %v153
    %160 = vmatpush.msra.mxu0 %v152
    %161 = vmatpush.msra.mxu0 %v151
    %162 = vmatpush.msra.mxu0 %v150
    %163 = vmatpush.msra.mxu0 %v149
    %164 = vmatpush.msra.mxu0 %v148
    %165 = vmatpush.msra.mxu0 %v147
    %166 = vmatpush.msra.mxu0 %v146
    %167 = vmatpush.msra.mxu0 %v145
    %168 = vmatpush.msra.mxu0 %v144
    %169 = vmatpush.msra.mxu0 %v143
    %170 = vmatpush.msra.mxu0 %v142
    %171 = vmatpush.msra.mxu0 %v141
    %172 = vmatpush.msra.mxu0 %v140
    %173 = vmatpush.msra.mxu0 %v139
    %174 = vmatpush.msra.mxu0 %v138
    %175 = vmatmul.f32.gmra.mxu0 %v137
    %v176 = vpop.f32.mrf.mxu0
    %v177 = vadd.f32 %v157, %v176
    %178 = vdwg.mxu0
    %v179 = vmax.f32 %v177, 0.0
    %v180 = vld [vmem:[#allocation10] sm:$0xff]
    %v181 = vld [vmem:[#allocation10 + $0x8] sm:$0xff]
    %v182 = vld [vmem:[#allocation10 + $0x10] sm:$0xff]
    %v183 = vld [vmem:[#allocation10 + $0x18] sm:$0xff]
    %v184 = vld [vmem:[#allocation10 + $0x20] sm:$0xff]
    %v185 = vld [vmem:[#allocation10 + $0x28] sm:$0xff]
    %v186 = vld [vmem:[#allocation10 + $0x30] sm:$0xff]
    %v187 = vld [vmem:[#allocation10 + $0x38] sm:$0xff]
    %v188 = vld [vmem:[#allocation10 + $0x40] sm:$0xff]
    %v189 = vld [vmem:[#allocation10 + $0x48] sm:$0xff]
    %v190 = vld [vmem:[#allocation10 + $0x50] sm:$0xff]
    %v191 = vld [vmem:[#allocation10 + $0x58] sm:$0xff]
    %v192 = vld [vmem:[#allocation10 + $0x60] sm:$0xff]
    %v193 = vld [vmem:[#allocation10 + $0x68] sm:$0xff]
    %v194 = vld [vmem:[#allocation10 + $0x70] sm:$0xff]
    %v195 = vld [vmem:[#allocation10 + $0x78] sm:$0xff]
    %v196 = vld [vmem:[%s5] sm:$0x1]
    %v198 = vperm.slane %v196, 0
    %200 = vmatpush.msra.mxu0 %v195
    %201 = vmatpush.msra.mxu0 %v194
    %202 = vmatpush.msra.mxu0 %v193
    %203 = vmatpush.msra.mxu0 %v192
    %204 = vmatpush.msra.mxu0 %v191
    %205 = vmatpush.msra.mxu0 %v190
    %206 = vmatpush.msra.mxu0 %v189
    %207 = vmatpush.msra.mxu0 %v188
    %208 = vmatpush.msra.mxu0 %v187
    %209 = vmatpush.msra.mxu0 %v186
    %210 = vmatpush.msra.mxu0 %v185
    %211 = vmatpush.msra.mxu0 %v184
    %212 = vmatpush.msra.mxu0 %v183
    %213 = vmatpush.msra.mxu0 %v182
    %214 = vmatpush.msra.mxu0 %v181
    %215 = vmatpush.msra.mxu0 %v180
    %216 = vmatmul.f32.gmra.mxu0 %v179
    %v217 = vpop.f32.mrf.mxu0
    %v218 = vadd.f32 %v198, %v217
    %219 = vdwg.mxu0
    %v220 = vmax.f32 %v218, 0.0
    %221 = vst [vmem:[#allocation11] sm:$0xff] %v220
    // Predicated region
    $region46: #{tpu_custom_call.1} parent=1 // pred_check
      _
    $region47: #{tpu_custom_call.1} parent=1 // pred_check_branch
      %223 = sbr.rel (0) target = $region49
    $region48: #{tpu_custom_call.1} parent=1 // pred_region
      %225 = vsyncadd [#allocation4], 0
      %s227 = sshll.u32 [#allocation11], 4
      %s228 = int_to_ptr.vmem [resolvable:$true] %s227
      %s229 = sshll.u32 %s6, 4
      %s230 = int_to_ptr.hbm [resolvable:$true] %s229
      %232 = dma.vmem_to_hbm [thread:$0]  %s228, 128, %s230, [#allocation4]
    $region49: #{tpu_custom_call.1} parent=1 // pred_fallthru
      _
    // Predicated region
    $region50: #{tpu_custom_call.1} parent=1 // pred_check
      _
    $region51: #{tpu_custom_call.1} parent=1 // pred_check_branch
      %234 = sbr.rel (0) target = $region53
    $region52: #{tpu_custom_call.1} parent=1 // pred_region
      %236 = dma.done [#allocation4], 128
    $region53: #{tpu_custom_call.1} parent=1 // pred_fallthru
      _
    %237 = vsyncpa [#allocation3], 1
    %238 = vsyncpa [#allocation6], 1
    %239 = vsyncpa [#allocation9], 1
    %240 = vsyncpa [#allocation4], 1

</llo_original>
